<compile_context>
chip_gen: v6e
topology: v6e:2x2x1
jax: 0.10.0
libtpu: 0.0.40
codegen_flags: <defaults>
</compile_context>

<pallas_src>
import functools

import jax
import jax.numpy as jnp
from jax.experimental import pallas as pl
from jax.experimental.pallas import tpu as pltpu

_LANE = 128     # lane width (last dim)
_SUBLANE = 8    # f32 sublane packing (second-to-last dim)


def _round_up(n, m):
    return ((n + m - 1) // m) * m


def _fused_mlp_kernel(*refs, n_layers: int, compute_dtype):
    # refs = (x_ref, w0_ref, b0_ref, w1_ref, b1_ref, ..., o_ref)
    x_ref = refs[0]
    o_ref = refs[-1]
    wb_refs = refs[1:-1]

    h = x_ref[...]
    for i in range(n_layers):
        w_ref = wb_refs[2 * i]
        b_ref = wb_refs[2 * i + 1]
        # MXU matmul: bf16 (default) inputs, f32 accumulation. Weights were
        # pre-cast to compute_dtype at prepare time -> no per-step weight cast.
        y = jnp.dot(h.astype(compute_dtype), w_ref[...],
                    preferred_element_type=jnp.float32)
        # Bias + activation in f32 (legal on v5e's f32-only VPU path).
        y = y + b_ref[...]
        if i < n_layers - 1:
            # TODO(synk): dropout is the inference-mode identity here; training
            # mode would need pltpu.prng_seed/prng_random_bits masking.
            y = jnp.maximum(y, 0.0)
        h = y
    o_ref[...] = h.astype(o_ref.dtype)


def init_mlp_params(dims, key):
    """Deterministic synthetic parameters with torch.nn.Linear shapes
    (weight: (out, in), bias: (out,)) and torch's default init bounds."""
    params = []
    for i in range(len(dims) - 1):
        key, kw, kb = jax.random.split(key, 3)
        bound = 1.0 / jnp.sqrt(jnp.float32(dims[i]))
        w = jax.random.uniform(kw, (dims[i + 1], dims[i]), jnp.float32,
                               minval=-bound, maxval=bound)
        b = jax.random.uniform(kb, (dims[i + 1],), jnp.float32,
                               minval=-bound, maxval=bound)
        params.append((w, b))
    return params


def prepare_mlp_params(params, compute_dtype=jnp.bfloat16):
    """One-time prep (outside the forward path): transpose weights to
    (in, out), zero-pad output dims to multiples of 128, and pre-cast the
    weights to the MXU compute dtype. The FIRST layer keeps its true input
    width (no K padding) so the wrapper never has to lane-pad x in HBM;
    hidden layers' K is padded to match the previous layer's padded output."""
    prepared = []
    for li, (w, b) in enumerate(params):
        out_f, in_f = w.shape
        k_pad = in_f if li == 0 else _round_up(in_f, _LANE)
        n_pad = _round_up(out_f, _LANE)
        w_t = jnp.zeros((k_pad, n_pad), jnp.float32).at[:in_f, :out_f].set(w.T)
        b_p = jnp.zeros((1, n_pad), jnp.float32).at[:, :out_f].set(
            b.reshape(1, -1))
        prepared.append((w_t.astype(compute_dtype), b_p))   # bias stays f32
    return prepared


def _choose_tm(m_rows, block_m):
    """Pick the batch tile: big enough to fill the MXU rows, >= 2 grid steps
    when the batch permits (v7x 2-TC sharding), tail waste <= ~12.5%."""
    tm = min(block_m, m_rows)
    if m_rows >= 2 * _SUBLANE:
        half = _round_up(-(-m_rows // 2), _SUBLANE)
        tm = min(tm, half)
    tm = max(_SUBLANE, _round_up(tm, _SUBLANE))
    while tm > _SUBLANE:
        m_pad = _round_up(m_rows, tm)
        if (m_pad - m_rows) * 8 <= m_pad:     # <= 12.5% padded-tail waste
            break
        tm = max(_SUBLANE, _round_up(tm // 2, _SUBLANE))
    return tm


def mlp_forward(x, prepared_params, out_features, *, block_m=512,
                trim_output=True):
    """Fused MLP forward: Linear -> [dropout(identity) -> ReLU] for all but
    the last layer, matching MLP.forward. x: (batch, in_features) float32."""
    M, K = x.shape
    n_layers = len(prepared_params)
    compute_dtype = prepared_params[0][0].dtype
    k0 = prepared_params[0][0].shape[0]
    n_last_pad = prepared_params[-1][0].shape[1]
    assert K == k0, f"x feature dim {K} != first-layer input dim {k0}"

    # Pad only the batch rows (to the tile size); features stay un-padded.
    m_rows = _round_up(max(M, _SUBLANE), _SUBLANE)
    tm = _choose_tm(m_rows, block_m)
    m_pad = _round_up(m_rows, tm)
    x_dev = x if m_pad == M else jnp.zeros((m_pad, K), x.dtype).at[:M].set(x)

    # Scheduler hint + explicit VMEM budget from the resident footprint.
    flops = 0
    bytes_accessed = m_pad * K * x.dtype.itemsize \
        + m_pad * n_last_pad * x.dtype.itemsize
    vmem_bytes = 2 * tm * K * x.dtype.itemsize \
        + 2 * tm * n_last_pad * x.dtype.itemsize
    for w_t, b_p in prepared_params:
        flops += 2 * m_pad * w_t.shape[0] * w_t.shape[1]
        bytes_accessed += w_t.size * w_t.dtype.itemsize \
            + b_p.size * b_p.dtype.itemsize
        vmem_bytes += 2 * (w_t.size * w_t.dtype.itemsize
                           + b_p.size * b_p.dtype.itemsize)
        vmem_bytes += tm * w_t.shape[1] * 4          # h spill headroom (f32)
    vmem_limit = int(min(max(2 * vmem_bytes, 16 << 20), 100 << 20))

    in_specs = [pl.BlockSpec((tm, K), lambda i: (i, 0))]
    flat_wb = []
    for w_t, b_p in prepared_params:
        # Constant index_map -> weights/bias are resident across the grid.
        in_specs.append(pl.BlockSpec(w_t.shape, lambda i: (0, 0)))
        in_specs.append(pl.BlockSpec(b_p.shape, lambda i: (0, 0)))
        flat_wb += [w_t, b_p]

    kernel = functools.partial(_fused_mlp_kernel, n_layers=n_layers,
                               compute_dtype=compute_dtype)
    out_pad = pl.pallas_call(
        kernel,
        out_shape=jax.ShapeDtypeStruct((m_pad, n_last_pad), x.dtype),
        grid=(m_pad // tm,),
        in_specs=in_specs,
        out_specs=pl.BlockSpec((tm, n_last_pad), lambda i: (i, 0)),
        compiler_params=pltpu.CompilerParams(
            dimension_semantics=("parallel",),
            vmem_limit_bytes=vmem_limit),
        cost_estimate=pl.CostEstimate(flops=flops, transcendentals=0,
                                      bytes_accessed=bytes_accessed),
    )(x_dev, *flat_wb)

    if not trim_output:
        return out_pad                     # padded lane-dense slab (m_pad,128k)
    return out_pad[:M, :out_features]


if __name__ == "__main__":
    key = jax.random.PRNGKey(0)
    dims = [16, 32, 32, 8]   # MLP(dims=[16, 32, 32, 8], act_f=relu, dropout=0.1)
    batch = 4

    key, kx, kp = jax.random.split(key, 3)
    x = jax.random.normal(kx, (batch, dims[0]), jnp.float32)
    params = init_mlp_params(dims, kp)

    # Plain-JAX reference of the original module (eval mode).
    ref = x
    for i, (w, b) in enumerate(params):
        ref = ref @ w.T + b
        if i < len(params) - 1:
            ref = jnp.maximum(ref, 0.0)

    fwd = jax.jit(functools.partial(mlp_forward, out_features=dims[-1]))

    # 1) Default fast path: bf16 MXU inputs, f32 accumulation.
    prepared_bf16 = prepare_mlp_params(params, compute_dtype=jnp.bfloat16)
    out_bf16 = jax.block_until_ready(fwd(x, prepared_bf16))
    assert out_bf16.shape == (batch, dims[-1])
    assert jnp.allclose(out_bf16, ref, atol=5e-2, rtol=5e-2)

    # 2) f32 path for bit-accuracy sanity (same kernel, f32 weights).
    prepared_f32 = prepare_mlp_params(params, compute_dtype=jnp.float32)
    out_f32 = jax.block_until_ready(fwd(x, prepared_f32))
    assert out_f32.shape == (batch, dims[-1])
    assert jnp.allclose(out_f32, ref, atol=1e-5, rtol=1e-5)

    print("KERNEL_OK")
</pallas_src>

<mosaic_0001>
module attributes {stable_mosaic.version = 11 : i64} {
  func.func @_fused_mlp_kernel(%arg0: i32, %arg1: memref<8x16xf32, #tpu.memory_space<vmem>>, %arg2: memref<16x128xbf16, #tpu.memory_space<vmem>>, %arg3: memref<1x128xf32, #tpu.memory_space<vmem>>, %arg4: memref<128x128xbf16, #tpu.memory_space<vmem>>, %arg5: memref<1x128xf32, #tpu.memory_space<vmem>>, %arg6: memref<128x128xbf16, #tpu.memory_space<vmem>>, %arg7: memref<1x128xf32, #tpu.memory_space<vmem>>, %arg8: memref<8x128xf32, #tpu.memory_space<vmem>>) attributes {dimension_semantics = [#tpu.dimension_semantics<parallel>], iteration_bounds = array<i64: 1>, scalar_prefetch = 0 : i64, scratch_operands = 0 : i64, tpu.core_type = #tpu.core_type<tc>, window_params = [{transform_indices = @transform_0, window_bounds = array<i64: 8, 16>}, {pipeline_mode = #tpu.pipeline_mode<synchronous>, transform_indices = @transform_1, window_bounds = array<i64: 16, 128>}, {pipeline_mode = #tpu.pipeline_mode<synchronous>, transform_indices = @transform_2, window_bounds = array<i64: 1, 128>}, {pipeline_mode = #tpu.pipeline_mode<synchronous>, transform_indices = @transform_3, window_bounds = array<i64: 128, 128>}, {pipeline_mode = #tpu.pipeline_mode<synchronous>, transform_indices = @transform_4, window_bounds = array<i64: 1, 128>}, {pipeline_mode = #tpu.pipeline_mode<synchronous>, transform_indices = @transform_5, window_bounds = array<i64: 128, 128>}, {pipeline_mode = #tpu.pipeline_mode<synchronous>, transform_indices = @transform_6, window_bounds = array<i64: 1, 128>}, {transform_indices = @transform_7, window_bounds = array<i64: 8, 128>}]} {
    %c0 = arith.constant 0 : index
    %c0_0 = arith.constant 0 : index
    %0 = vector.load %arg1[%c0, %c0_0] : memref<8x16xf32, #tpu.memory_space<vmem>>, vector<8x16xf32>
    %1 = arith.truncf %0 : vector<8x16xf32> to vector<8x16xbf16>
    %c0_1 = arith.constant 0 : index
    %c0_2 = arith.constant 0 : index
    %2 = vector.load %arg2[%c0_1, %c0_2] : memref<16x128xbf16, #tpu.memory_space<vmem>>, vector<16x128xbf16>
    %cst = arith.constant dense<0.000000e+00> : vector<8x128xf32>
    %3 = tpu.matmul %1, %2, %cst {dimension_numbers = #tpu.dot_dimension_numbers<[1], [0], [0], [1], [0, 0, 1, 1], [], []>} : vector<8x16xbf16>, vector<16x128xbf16>, vector<8x128xf32> -> vector<8x128xf32>
    %c0_3 = arith.constant 0 : index
    %c0_4 = arith.constant 0 : index
    %4 = vector.load %arg3[%c0_3, %c0_4] : memref<1x128xf32, #tpu.memory_space<vmem>>, vector<1x128xf32>
    %5 = vector.broadcast %4 : vector<1x128xf32> to vector<8x128xf32>
    %6 = arith.addf %3, %5 : vector<8x128xf32>
    %cst_5 = arith.constant 0.000000e+00 : f32
    %7 = vector.broadcast %cst_5 : f32 to vector<8x128xf32>
    %8 = arith.maximumf %6, %7 : vector<8x128xf32>
    %9 = arith.truncf %8 : vector<8x128xf32> to vector<8x128xbf16>
    %c0_6 = arith.constant 0 : index
    %c0_7 = arith.constant 0 : index
    %10 = vector.load %arg4[%c0_6, %c0_7] : memref<128x128xbf16, #tpu.memory_space<vmem>>, vector<128x128xbf16>
    %cst_8 = arith.constant dense<0.000000e+00> : vector<8x128xf32>
    %11 = tpu.matmul %9, %10, %cst_8 {dimension_numbers = #tpu.dot_dimension_numbers<[1], [0], [0], [1], [0, 0, 1, 1], [], []>} : vector<8x128xbf16>, vector<128x128xbf16>, vector<8x128xf32> -> vector<8x128xf32>
    %c0_9 = arith.constant 0 : index
    %c0_10 = arith.constant 0 : index
    %12 = vector.load %arg5[%c0_9, %c0_10] : memref<1x128xf32, #tpu.memory_space<vmem>>, vector<1x128xf32>
    %13 = vector.broadcast %12 : vector<1x128xf32> to vector<8x128xf32>
    %14 = arith.addf %11, %13 : vector<8x128xf32>
    %cst_11 = arith.constant 0.000000e+00 : f32
    %15 = vector.broadcast %cst_11 : f32 to vector<8x128xf32>
    %16 = arith.maximumf %14, %15 : vector<8x128xf32>
    %17 = arith.truncf %16 : vector<8x128xf32> to vector<8x128xbf16>
    %c0_12 = arith.constant 0 : index
    %c0_13 = arith.constant 0 : index
    %18 = vector.load %arg6[%c0_12, %c0_13] : memref<128x128xbf16, #tpu.memory_space<vmem>>, vector<128x128xbf16>
    %cst_14 = arith.constant dense<0.000000e+00> : vector<8x128xf32>
    %19 = tpu.matmul %17, %18, %cst_14 {dimension_numbers = #tpu.dot_dimension_numbers<[1], [0], [0], [1], [0, 0, 1, 1], [], []>} : vector<8x128xbf16>, vector<128x128xbf16>, vector<8x128xf32> -> vector<8x128xf32>
    %c0_15 = arith.constant 0 : index
    %c0_16 = arith.constant 0 : index
    %20 = vector.load %arg7[%c0_15, %c0_16] : memref<1x128xf32, #tpu.memory_space<vmem>>, vector<1x128xf32>
    %21 = vector.broadcast %20 : vector<1x128xf32> to vector<8x128xf32>
    %22 = arith.addf %19, %21 : vector<8x128xf32>
    %c0_17 = arith.constant 0 : index
    %c0_18 = arith.constant 0 : index
    %23 = vector.load %arg8[%c0_17, %c0_18] : memref<8x128xf32, #tpu.memory_space<vmem>>, vector<8x128xf32>
    tpu.vector_store %arg8[%c0_17, %c0_18], %22 {strides = array<i32>} : memref<8x128xf32, #tpu.memory_space<vmem>>, vector<8x128xf32>,
    return
  }
  func.func @transform_0(%arg0: i32) -> (i32, i32) {
    %c0_i32 = arith.constant 0 : i32
    %c0_i32_0 = arith.constant 0 : i32
    return %arg0, %c0_i32 : i32, i32
  }
  func.func @transform_1(%arg0: i32) -> (i32, i32) {
    %c0_i32 = arith.constant 0 : i32
    %c0_i32_0 = arith.constant 0 : i32
    %c0_i32_1 = arith.constant 0 : i32
    return %c0_i32, %c0_i32_0 : i32, i32
  }
  func.func @transform_2(%arg0: i32) -> (i32, i32) {
    %c0_i32 = arith.constant 0 : i32
    %c0_i32_0 = arith.constant 0 : i32
    %c0_i32_1 = arith.constant 0 : i32
    return %c0_i32, %c0_i32_0 : i32, i32
  }
  func.func @transform_3(%arg0: i32) -> (i32, i32) {
    %c0_i32 = arith.constant 0 : i32
    %c0_i32_0 = arith.constant 0 : i32
    %c0_i32_1 = arith.constant 0 : i32
    return %c0_i32, %c0_i32_0 : i32, i32
  }
  func.func @transform_4(%arg0: i32) -> (i32, i32) {
    %c0_i32 = arith.constant 0 : i32
    %c0_i32_0 = arith.constant 0 : i32
    %c0_i32_1 = arith.constant 0 : i32
    return %c0_i32, %c0_i32_0 : i32, i32
  }
  func.func @transform_5(%arg0: i32) -> (i32, i32) {
    %c0_i32 = arith.constant 0 : i32
    %c0_i32_0 = arith.constant 0 : i32
    %c0_i32_1 = arith.constant 0 : i32
    return %c0_i32, %c0_i32_0 : i32, i32
  }
  func.func @transform_6(%arg0: i32) -> (i32, i32) {
    %c0_i32 = arith.constant 0 : i32
    %c0_i32_0 = arith.constant 0 : i32
    %c0_i32_1 = arith.constant 0 : i32
    return %c0_i32, %c0_i32_0 : i32, i32
  }
  func.func @transform_7(%arg0: i32) -> (i32, i32) {
    %c0_i32 = arith.constant 0 : i32
    %c0_i32_0 = arith.constant 0 : i32
    return %arg0, %c0_i32 : i32, i32
  }
}

</mosaic_0001>

<llo_original>
// kernel: mlp_forward.1
$region0: #{mlp_forward.1}
  #allocation0 [shape = 'u32[]', space=smem, size = 0x4, offset = 0x4, fixed_abs, tag = 'smem constant byte address 0x4 - core index']
  #allocation1 [shape = 'u32[144,128]{1,0:T(1,128)}', space=vmem, size = 0x12000, scoped, tag = 'internal scratch']
  %s0 = inlined_call_operand.vmem [shape: f32[8,16], index: 0, kind: input, shape index: {}]
  %s1 = inlined_call_operand.vmem [shape: bf16[16,128], index: 1, kind: input, shape index: {}]
  %s2 = inlined_call_operand.vmem [shape: f32[1,128], index: 2, kind: input, shape index: {}]
  %s3 = inlined_call_operand.hbm [shape: bf16[128,128], index: 3, kind: input, shape index: {}]
  %s4 = inlined_call_operand.vmem [shape: f32[1,128], index: 4, kind: input, shape index: {}]
  %s5 = inlined_call_operand.hbm [shape: bf16[128,128], index: 5, kind: input, shape index: {}]
  %s6 = inlined_call_operand.vmem [shape: f32[1,128], index: 6, kind: input, shape index: {}]
  %s7 = inlined_call_operand.vmem [shape: f32[8,128], index: 7, kind: output, shape index: {}]
  %s8 = sld [smem:[#allocation0]]
  $region46: #{mlp_forward.1} parent=0
    _
  %s10 = ssub.s32 1, %s8
  %s11 = scalar_select 0, %s10, %s8
  $region1: #{mlp_forward.1} parent=0
    #allocation2 [shape = 'u8[32768]{0}', space=vmem, size = 0x8000, scoped, tag = 'input window, operand 3, single buffered']
    #allocation3 [shape = 's32[1]{0}', space=sflag, size = 0x4, scoped, tag = 'scoped memory for mlp_forward.1']
    #allocation4 [shape = 'u8[32768]{0}', space=vmem, size = 0x8000, scoped, tag = 'input window, operand 5, single buffered']
    #allocation5 [shape = 's32[1]{0}', space=sflag, size = 0x4, scoped, tag = 'scoped memory for mlp_forward.1']
    %12 = vsyncpa [#allocation3], 0
    %13 = vsyncpa [#allocation5], 0
    // Predicated region
    $region2: #{mlp_forward.1} parent=1 // pred_check
      _
    $region3: #{mlp_forward.1} parent=1 // pred_check_branch
      %15 = sbr.rel (0) target = $region5
    $region4: #{mlp_forward.1} parent=1 // pred_region
      _
    $region5: #{mlp_forward.1} parent=1 // pred_fallthru
      _
    // Predicated region
    $region6: #{mlp_forward.1} parent=1 // pred_check
      _
    $region7: #{mlp_forward.1} parent=1 // pred_check_branch
      %17 = sbr.rel (0) target = $region9
    $region8: #{mlp_forward.1} parent=1 // pred_region
      _
    $region9: #{mlp_forward.1} parent=1 // pred_fallthru
      _
    // Predicated region
    $region10: #{mlp_forward.1} parent=1 // pred_check
      _
    $region11: #{mlp_forward.1} parent=1 // pred_check_branch
      %19 = sbr.rel (0) target = $region13
    $region12: #{mlp_forward.1} parent=1 // pred_region
      _
    $region13: #{mlp_forward.1} parent=1 // pred_fallthru
      _
    // Predicated region
    $region14: #{mlp_forward.1} parent=1 // pred_check
      _
    $region15: #{mlp_forward.1} parent=1 // pred_check_branch
      %21 = sbr.rel (0) target = $region17
    $region16: #{mlp_forward.1} parent=1 // pred_region
      %s23 = ssub.s32 1024, 1024
      %24 = vsyncadd [#allocation3], %s23
      %s25 = sshll.u32 [#allocation2], 4
      %s26 = int_to_ptr.vmem [resolvable:$true] %s25
      %31 = dma.hbm_to_vmem [thread:$0]  %s3, 1024, %s26, [#allocation3], 64, 64, 4
    $region17: #{mlp_forward.1} parent=1 // pred_fallthru
      _
    // Predicated region
    $region18: #{mlp_forward.1} parent=1 // pred_check
      _
    $region19: #{mlp_forward.1} parent=1 // pred_check_branch
      %33 = sbr.rel (0) target = $region21
    $region20: #{mlp_forward.1} parent=1 // pred_region
      _
    $region21: #{mlp_forward.1} parent=1 // pred_fallthru
      _
    // Predicated region
    $region22: #{mlp_forward.1} parent=1 // pred_check
      _
    $region23: #{mlp_forward.1} parent=1 // pred_check_branch
      %35 = sbr.rel (0) target = $region25
    $region24: #{mlp_forward.1} parent=1 // pred_region
      %s37 = ssub.s32 1024, 1024
      %38 = vsyncadd [#allocation5], %s37
      %s39 = sshll.u32 [#allocation4], 4
      %s40 = int_to_ptr.vmem [resolvable:$true] %s39
      %45 = dma.hbm_to_vmem [thread:$0]  %s5, 1024, %s40, [#allocation5], 64, 64, 4
    $region25: #{mlp_forward.1} parent=1 // pred_fallthru
      _
    // Predicated region
    $region26: #{mlp_forward.1} parent=1 // pred_check
      _
    $region27: #{mlp_forward.1} parent=1 // pred_check_branch
      %47 = sbr.rel (0) target = $region29
    $region28: #{mlp_forward.1} parent=1 // pred_region
      _
    $region29: #{mlp_forward.1} parent=1 // pred_fallthru
      _
    // Predicated region
    $region30: #{mlp_forward.1} parent=1 // pred_check
      _
    $region31: #{mlp_forward.1} parent=1 // pred_check_branch
      %49 = sbr.rel (0) target = $region33
    $region32: #{mlp_forward.1} parent=1 // pred_region
      %50 = dma.done [#allocation3], 1024
    $region33: #{mlp_forward.1} parent=1 // pred_fallthru
      _
    // Predicated region
    $region34: #{mlp_forward.1} parent=1 // pred_check
      _
    $region35: #{mlp_forward.1} parent=1 // pred_check_branch
      %52 = sbr.rel (0) target = $region37
    $region36: #{mlp_forward.1} parent=1 // pred_region
      %53 = dma.done [#allocation5], 1024
    $region37: #{mlp_forward.1} parent=1 // pred_fallthru
      _
    %v55 = vld [vmem:[%s0] sm:$0xff]
    %v56 = vpack.c.bf16 %v55, %v55
    %v57 = vld [vmem:[%s1] sm:$0xf]
    %v58 = vld [vmem:[%s1 + $0x4] sm:$0xf]
    %v59 = vld [vmem:[%s2] sm:$0x1]
    %v61 = vlaneseq
    %v62 = vshrl.u32 %v61, 7
    %v63 = vsub.s32 0, %v62
    %v64 = vrot.slane %v59, %v63
    %v68 = vunpack.c.l.b16 %v57
    %v69 = vunpack.c.l.b16 %v58
    %v70 = vpack.c.b16 %v69, %v68
    %vm72 = vcmask 130048
    %v74 = vsel %vm72, %v56, 0
    %76 = vmatprep.subr.bf16.mxu0 0
    %77 = vmatpush1.bf16.msra.mxu0 0
    %78 = vmatprep.subr.bf16.mxu0 0
    %79 = vmatpush1.bf16.msra.mxu0 0
    %80 = vmatprep.subr.bf16.mxu0 0
    %81 = vmatpush1.bf16.msra.mxu0 0
    %82 = vmatprep.subr.bf16.mxu0 0
    %83 = vmatpush1.bf16.msra.mxu0 0
    %84 = vmatprep.subr.bf16.mxu0 0
    %85 = vmatpush1.bf16.msra.mxu0 0
    %86 = vmatprep.subr.bf16.mxu0 0
    %87 = vmatpush1.bf16.msra.mxu0 0
    %88 = vmatprep.subr.bf16.mxu0 0
    %89 = vmatpush1.bf16.msra.mxu0 0
    %90 = vmatprep.subr.bf16.mxu0 0
    %91 = vmatpush1.bf16.msra.mxu0 %v70
    %92 = vmatprep.subr.bf16.mxu0 0
    %93 = vmatpush2.bf16.msra.mxu0 0
    %94 = vmatprep.subr.bf16.mxu0 0
    %95 = vmatpush2.bf16.msra.mxu0 0
    %96 = vmatprep.subr.bf16.mxu0 0
    %97 = vmatpush2.bf16.msra.mxu0 0
    %98 = vmatprep.subr.bf16.mxu0 0
    %99 = vmatpush2.bf16.msra.mxu0 0
    %100 = vmatprep.subr.bf16.mxu0 0
    %101 = vmatpush2.bf16.msra.mxu0 0
    %102 = vmatprep.subr.bf16.mxu0 0
    %103 = vmatpush2.bf16.msra.mxu0 0
    %104 = vmatprep.subr.bf16.mxu0 0
    %105 = vmatpush2.bf16.msra.mxu0 0
    %106 = vmatprep.subr.bf16.mxu0 0
    %107 = vmatpush2.bf16.msra.mxu0 0
    %108 = vmatprep.mubr.bf16.mxu0 0
    %109 = vmatmul.mubr.bf16.gmra.mxu0 %v74
    %v110 = vpop.f32.mrf.mxu0
    %v111 = vadd.f32 %v64, %v110
    %v112 = vpop.f32.mrf.mxu0
    %v113 = vpop.f32.mrf.mxu0
    %v114 = vpop.f32.mrf.mxu0
    %115 = vdwg.mxu0
    %v116 = vmax.f32 %v111, 0.0
    %v117 = vpack.c.bf16 %v116, %v116
    %v118 = vld [vmem:[#allocation2] sm:$0xf]
    %v119 = vld [vmem:[#allocation2 + $0x4] sm:$0xf]
    %v120 = vld [vmem:[#allocation2 + $0x8] sm:$0xf]
    %v121 = vld [vmem:[#allocation2 + $0xc] sm:$0xf]
    %v122 = vld [vmem:[#allocation2 + $0x10] sm:$0xf]
    %v123 = vld [vmem:[#allocation2 + $0x14] sm:$0xf]
    %v124 = vld [vmem:[#allocation2 + $0x18] sm:$0xf]
    %v125 = vld [vmem:[#allocation2 + $0x1c] sm:$0xf]
    %v126 = vld [vmem:[#allocation2 + $0x20] sm:$0xf]
    %v127 = vld [vmem:[#allocation2 + $0x24] sm:$0xf]
    %v128 = vld [vmem:[#allocation2 + $0x28] sm:$0xf]
    %v129 = vld [vmem:[#allocation2 + $0x2c] sm:$0xf]
    %v130 = vld [vmem:[#allocation2 + $0x30] sm:$0xf]
    %v131 = vld [vmem:[#allocation2 + $0x34] sm:$0xf]
    %v132 = vld [vmem:[#allocation2 + $0x38] sm:$0xf]
    %v133 = vld [vmem:[#allocation2 + $0x3c] sm:$0xf]
    %v134 = vld [vmem:[%s4] sm:$0x1]
    %v136 = vlaneseq
    %v137 = vshrl.u32 %v136, 7
    %v138 = vsub.s32 0, %v137
    %v139 = vrot.slane %v134, %v138
    %v157 = vunpack.c.l.b16 %v118
    %v158 = vunpack.c.l.b16 %v119
    %v159 = vunpack.c.l.b16 %v120
    %v160 = vunpack.c.l.b16 %v121
    %v161 = vunpack.c.l.b16 %v122
    %v162 = vunpack.c.l.b16 %v123
    %v163 = vunpack.c.l.b16 %v124
    %v164 = vunpack.c.l.b16 %v125
    %v165 = vunpack.c.l.b16 %v126
    %v166 = vunpack.c.l.b16 %v127
    %v167 = vunpack.c.l.b16 %v128
    %v168 = vunpack.c.l.b16 %v129
    %v169 = vunpack.c.l.b16 %v130
    %v170 = vunpack.c.l.b16 %v131
    %v171 = vunpack.c.l.b16 %v132
    %v172 = vunpack.c.l.b16 %v133
    %v173 = vpack.c.b16 %v158, %v157
    %v174 = vpack.c.b16 %v160, %v159
    %v175 = vpack.c.b16 %v162, %v161
    %v176 = vpack.c.b16 %v164, %v163
    %v177 = vpack.c.b16 %v166, %v165
    %v178 = vpack.c.b16 %v168, %v167
    %v179 = vpack.c.b16 %v170, %v169
    %v180 = vpack.c.b16 %v172, %v171
    %189 = vmatprep.subr.bf16.mxu0 0
    %190 = vmatpush1.bf16.msra.mxu0 %v180
    %191 = vmatprep.subr.bf16.mxu0 0
    %192 = vmatpush1.bf16.msra.mxu0 %v179
    %193 = vmatprep.subr.bf16.mxu0 0
    %194 = vmatpush1.bf16.msra.mxu0 %v178
    %195 = vmatprep.subr.bf16.mxu0 0
    %196 = vmatpush1.bf16.msra.mxu0 %v177
    %197 = vmatprep.subr.bf16.mxu0 0
    %198 = vmatpush1.bf16.msra.mxu0 %v176
    %199 = vmatprep.subr.bf16.mxu0 0
    %200 = vmatpush1.bf16.msra.mxu0 %v175
    %201 = vmatprep.subr.bf16.mxu0 0
    %202 = vmatpush1.bf16.msra.mxu0 %v174
    %203 = vmatprep.subr.bf16.mxu0 0
    %204 = vmatpush1.bf16.msra.mxu0 %v173
    %205 = vmatprep.subr.bf16.mxu0 0
    %206 = vmatpush2.bf16.msra.mxu0 0
    %207 = vmatprep.subr.bf16.mxu0 0
    %208 = vmatpush2.bf16.msra.mxu0 0
    %209 = vmatprep.subr.bf16.mxu0 0
    %210 = vmatpush2.bf16.msra.mxu0 0
    %211 = vmatprep.subr.bf16.mxu0 0
    %212 = vmatpush2.bf16.msra.mxu0 0
    %213 = vmatprep.subr.bf16.mxu0 0
    %214 = vmatpush2.bf16.msra.mxu0 0
    %215 = vmatprep.subr.bf16.mxu0 0
    %216 = vmatpush2.bf16.msra.mxu0 0
    %217 = vmatprep.subr.bf16.mxu0 0
    %218 = vmatpush2.bf16.msra.mxu0 0
    %219 = vmatprep.subr.bf16.mxu0 0
    %220 = vmatpush2.bf16.msra.mxu0 0
    %221 = vmatprep.mubr.bf16.mxu0 0
    %222 = vmatmul.mubr.bf16.gmra.mxu0 %v117
    %v223 = vpop.f32.mrf.mxu0
    %v224 = vadd.f32 %v139, %v223
    %v225 = vpop.f32.mrf.mxu0
    %v226 = vpop.f32.mrf.mxu0
    %v227 = vpop.f32.mrf.mxu0
    %228 = vdwg.mxu0
    %v229 = vmax.f32 %v224, 0.0
    %v230 = vpack.c.bf16 %v229, %v229
    %v231 = vld [vmem:[#allocation4] sm:$0xf]
    %v232 = vld [vmem:[#allocation4 + $0x4] sm:$0xf]
    %v233 = vld [vmem:[#allocation4 + $0x8] sm:$0xf]
    %v234 = vld [vmem:[#allocation4 + $0xc] sm:$0xf]
    %v235 = vld [vmem:[#allocation4 + $0x10] sm:$0xf]
    %v236 = vld [vmem:[#allocation4 + $0x14] sm:$0xf]
    %v237 = vld [vmem:[#allocation4 + $0x18] sm:$0xf]
    %v238 = vld [vmem:[#allocation4 + $0x1c] sm:$0xf]
    %v239 = vld [vmem:[#allocation4 + $0x20] sm:$0xf]
    %v240 = vld [vmem:[#allocation4 + $0x24] sm:$0xf]
    %v241 = vld [vmem:[#allocation4 + $0x28] sm:$0xf]
    %v242 = vld [vmem:[#allocation4 + $0x2c] sm:$0xf]
    %v243 = vld [vmem:[#allocation4 + $0x30] sm:$0xf]
    %v244 = vld [vmem:[#allocation4 + $0x34] sm:$0xf]
    %v245 = vld [vmem:[#allocation4 + $0x38] sm:$0xf]
    %v246 = vld [vmem:[#allocation4 + $0x3c] sm:$0xf]
    %v247 = vld [vmem:[%s6] sm:$0x1]
    %v249 = vlaneseq
    %v250 = vshrl.u32 %v249, 7
    %v251 = vsub.s32 0, %v250
    %v252 = vrot.slane %v247, %v251
    %v270 = vunpack.c.l.b16 %v231
    %v271 = vunpack.c.l.b16 %v232
    %v272 = vunpack.c.l.b16 %v233
    %v273 = vunpack.c.l.b16 %v234
    %v274 = vunpack.c.l.b16 %v235
    %v275 = vunpack.c.l.b16 %v236
    %v276 = vunpack.c.l.b16 %v237
    %v277 = vunpack.c.l.b16 %v238
    %v278 = vunpack.c.l.b16 %v239
    %v279 = vunpack.c.l.b16 %v240
    %v280 = vunpack.c.l.b16 %v241
    %v281 = vunpack.c.l.b16 %v242
    %v282 = vunpack.c.l.b16 %v243
    %v283 = vunpack.c.l.b16 %v244
    %v284 = vunpack.c.l.b16 %v245
    %v285 = vunpack.c.l.b16 %v246
    %v286 = vpack.c.b16 %v271, %v270
    %v287 = vpack.c.b16 %v273, %v272
    %v288 = vpack.c.b16 %v275, %v274
    %v289 = vpack.c.b16 %v277, %v276
    %v290 = vpack.c.b16 %v279, %v278
    %v291 = vpack.c.b16 %v281, %v280
    %v292 = vpack.c.b16 %v283, %v282
    %v293 = vpack.c.b16 %v285, %v284
    %302 = vmatprep.subr.bf16.mxu0 0
    %303 = vmatpush1.bf16.msra.mxu0 %v293
    %304 = vmatprep.subr.bf16.mxu0 0
    %305 = vmatpush1.bf16.msra.mxu0 %v292
    %306 = vmatprep.subr.bf16.mxu0 0
    %307 = vmatpush1.bf16.msra.mxu0 %v291
    %308 = vmatprep.subr.bf16.mxu0 0
    %309 = vmatpush1.bf16.msra.mxu0 %v290
    %310 = vmatprep.subr.bf16.mxu0 0
    %311 = vmatpush1.bf16.msra.mxu0 %v289
    %312 = vmatprep.subr.bf16.mxu0 0
    %313 = vmatpush1.bf16.msra.mxu0 %v288
    %314 = vmatprep.subr.bf16.mxu0 0
    %315 = vmatpush1.bf16.msra.mxu0 %v287
    %316 = vmatprep.subr.bf16.mxu0 0
    %317 = vmatpush1.bf16.msra.mxu0 %v286
    %318 = vmatprep.subr.bf16.mxu0 0
    %319 = vmatpush2.bf16.msra.mxu0 0
    %320 = vmatprep.subr.bf16.mxu0 0
    %321 = vmatpush2.bf16.msra.mxu0 0
    %322 = vmatprep.subr.bf16.mxu0 0
    %323 = vmatpush2.bf16.msra.mxu0 0
    %324 = vmatprep.subr.bf16.mxu0 0
    %325 = vmatpush2.bf16.msra.mxu0 0
    %326 = vmatprep.subr.bf16.mxu0 0
    %327 = vmatpush2.bf16.msra.mxu0 0
    %328 = vmatprep.subr.bf16.mxu0 0
    %329 = vmatpush2.bf16.msra.mxu0 0
    %330 = vmatprep.subr.bf16.mxu0 0
    %331 = vmatpush2.bf16.msra.mxu0 0
    %332 = vmatprep.subr.bf16.mxu0 0
    %333 = vmatpush2.bf16.msra.mxu0 0
    %334 = vmatprep.mubr.bf16.mxu0 0
    %335 = vmatmul.mubr.bf16.gmra.mxu0 %v230
    %v336 = vpop.f32.mrf.mxu0
    %v337 = vadd.f32 %v252, %v336
    %v338 = vpop.f32.mrf.mxu0
    %v339 = vpop.f32.mrf.mxu0
    %v340 = vpop.f32.mrf.mxu0
    %341 = vdwg.mxu0
    %342 = vst [vmem:[%s7] sm:$0xff] %v337
    // Predicated region
    $region38: #{mlp_forward.1} parent=1 // pred_check
      _
    $region39: #{mlp_forward.1} parent=1 // pred_check_branch
      %344 = sbr.rel (0) target = $region41
    $region40: #{mlp_forward.1} parent=1 // pred_region
      _
    $region41: #{mlp_forward.1} parent=1 // pred_fallthru
      _
    // Predicated region
    $region42: #{mlp_forward.1} parent=1 // pred_check
      _
    $region43: #{mlp_forward.1} parent=1 // pred_check_branch
      %346 = sbr.rel (0) target = $region45
    $region44: #{mlp_forward.1} parent=1 // pred_region
      _
    $region45: #{mlp_forward.1} parent=1 // pred_fallthru
      _
    %347 = vsyncpa [#allocation3], 1
    %348 = vsyncpa [#allocation5], 1

</llo_original>
